<compile_context>
chip_gen: v6e
topology: v6e:2x2x1
jax: 0.10.0
libtpu: 0.0.40
codegen_flags: <defaults>
</compile_context>

<pallas_src>
import functools

import jax
import jax.numpy as jnp
from jax.experimental import pallas as pl
from jax.experimental.pallas import tpu as pltpu

EPS = 1e-5  # torch.nn.InstanceNorm2d default eps


def _residual_block_kernel(x_ref, w1_ref, b1_ref, w2_ref, b2_ref, o_ref,
                           patch_ref, *, H, W, C, compute_dtype):
    HW = H * W

    # Static boundary masks in the flat (C, H*W) layout (hoisted once, reused
    # by both convs).  Only iota + compares (+ an AND when W is a power of 2).
    lane = jax.lax.broadcasted_iota(jnp.int32, (C, HW), 1)
    if (W & (W - 1)) == 0:
        col = lane & (W - 1)
    else:
        col = lane % W
    is_w0 = col == 0
    is_wl = col == W - 1
    is_h0 = lane < W
    is_hl = lane >= (H - 1) * W

    def taps(v, is_lo, is_hi, step):
        # v: (C, H*W) flat; spatial neighbours along one axis are `step` lanes
        # apart.  Returns the (-1, 0, +1) taps with 1-px reflection at the
        # boundaries.  Rolls are lane rotations; selects are VPU.
        fwd = jnp.roll(v, -step, axis=-1)   # fwd[p] = v[p + step]
        bwd = jnp.roll(v, step, axis=-1)    # bwd[p] = v[p - step]
        return (jnp.where(is_lo, fwd, bwd), v, jnp.where(is_hi, bwd, fwd))

    def conv3x3(v, w_ref, b_ref):
        # Reflect-pad + 3x3 conv as one (C, 9C) x (9C, H*W) MXU contraction
        # with f32 accumulation.  Patches land lane-dense in a VMEM scratch.
        t = 0
        for r in taps(v, is_h0, is_hl, W):          # dh = 0, 1, 2
            for p in taps(r, is_w0, is_wl, 1):      # dw = 0, 1, 2
                patch_ref[t * C:(t + 1) * C, :] = p
                t += 1
        acc = jnp.dot(w_ref[...], patch_ref[...],
                      preferred_element_type=jnp.float32)   # (C, H*W) f32
        return acc + b_ref[...]

    def instance_norm(a):
        # Two-pass per-channel stats (biased variance), f32, lane-dense reduce.
        inv_n = 1.0 / HW
        mean = jnp.sum(a, axis=-1, keepdims=True) * inv_n
        cen = a - mean
        var = jnp.sum(cen * cen, axis=-1, keepdims=True) * inv_n
        return cen * jax.lax.rsqrt(var + EPS)

    x = x_ref[0]                                             # (C, H*W)
    h1 = jnp.maximum(
        instance_norm(conv3x3(x.astype(compute_dtype), w1_ref, b1_ref)), 0.0)
    h2 = instance_norm(conv3x3(h1.astype(compute_dtype), w2_ref, b2_ref))
    o_ref[0] = (x.astype(jnp.float32) + h2).astype(o_ref.dtype)


def _device_vmem_bytes():
    try:
        info = pltpu.get_tpu_info()
        for attr in ("vmem_capacity_bytes", "vmem_bytes", "vmem_size_bytes"):
            v = getattr(info, attr, None)
            if v:
                return int(v)
    except Exception:
        pass
    return 64 * 1024 * 1024   # conservative: v7x per-TensorCore VMEM


def _default_compute_dtype():
    # bf16 conv operands on v6e/v7x; f32 elsewhere (v5e has no bf16 VPU and a
    # single vector-store slot, and the bf16 MXU gain is negligible at K=9C).
    try:
        kind = jax.devices()[0].device_kind.lower()
    except Exception:
        return jnp.float32
    return jnp.bfloat16 if ("v6" in kind or "v7" in kind) else jnp.float32


def _vmem_limit_bytes(C, HW, io_dtype, compute_dtype):
    ib = jnp.dtype(io_dtype).itemsize
    cb = jnp.dtype(compute_dtype).itemsize
    blk = C * HW
    est = (
        2 * blk * ib                        # input block (double-buffered)
        + 2 * blk * ib                      # output block (double-buffered)
        + 2 * 2 * (9 * C * C * cb + C * 4)  # w1/w2 + b1/b2
        + 9 * blk * cb                      # im2col scratch
        + 8 * blk * cb                      # tap temporaries
        + 12 * blk * 4                      # f32 accum / IN temps / residual
    )
    est = 2 * est + (1 << 20)
    cap = int(0.85 * _device_vmem_bytes())
    return int(max(min(est, cap), min(32 * 1024 * 1024, cap)))


def residual_block_flat(x_flat, w1_mat, b1, w2_mat, b2, *, H, W, compute_dtype):
    """x_flat: (N, C, H*W); w*_mat: (C, 9C); b*: (C, 1) f32."""
    N, C, HW = x_flat.shape
    kernel = functools.partial(_residual_block_kernel, H=H, W=W, C=C,
                               compute_dtype=compute_dtype)
    return pl.pallas_call(
        kernel,
        out_shape=jax.ShapeDtypeStruct((N, C, HW), x_flat.dtype),
        grid_spec=pltpu.PrefetchScalarGridSpec(
            num_scalar_prefetch=0,
            grid=(N,),
            in_specs=[
                pl.BlockSpec((1, C, HW), lambda n: (n, 0, 0)),
                pl.BlockSpec((C, 9 * C), lambda n: (0, 0)),
                pl.BlockSpec((C, 1), lambda n: (0, 0)),
                pl.BlockSpec((C, 9 * C), lambda n: (0, 0)),
                pl.BlockSpec((C, 1), lambda n: (0, 0)),
            ],
            out_specs=pl.BlockSpec((1, C, HW), lambda n: (n, 0, 0)),
            scratch_shapes=[pltpu.VMEM((9 * C, HW), compute_dtype)],
        ),
        compiler_params=pltpu.CompilerParams(
            dimension_semantics=("parallel",),
            vmem_limit_bytes=_vmem_limit_bytes(C, HW, x_flat.dtype,
                                               compute_dtype)),
    )(x_flat, w1_mat, b1, w2_mat, b2)


def residual_block_nchw(x_nchw, w1_oihw, b1, w2_oihw, b2, *,
                        compute_dtype=None):
    """PyTorch-facing wrapper: NCHW in / NCHW out, OIHW conv weights."""
    N, C, H, W = x_nchw.shape
    assert H >= 2 and W >= 2, "1-px reflection pad needs H >= 2 and W >= 2"
    if compute_dtype is None:
        compute_dtype = _default_compute_dtype()
    # OIHW -> (c_out, kh, kw, c_in) -> (C, 9C): K index = (dh*3 + dw)*C + c_in.
    w1m = jnp.transpose(w1_oihw, (0, 2, 3, 1)).reshape(C, 9 * C).astype(compute_dtype)
    w2m = jnp.transpose(w2_oihw, (0, 2, 3, 1)).reshape(C, 9 * C).astype(compute_dtype)
    b1c = b1.astype(jnp.float32).reshape(C, 1)
    b2c = b2.astype(jnp.float32).reshape(C, 1)
    x_flat = x_nchw.reshape(N, C, H * W)          # free reshape, no transpose
    y = residual_block_flat(x_flat, w1m, b1c, w2m, b2c, H=H, W=W,
                            compute_dtype=compute_dtype)
    return y.reshape(N, C, H, W)


# ---------------- pure-JAX reference (for correctness check) ----------------
def _ref_forward(x, w1, b1, w2, b2):  # NCHW / OIHW, f32
    def refl_pad(z):
        return jnp.pad(z, ((0, 0), (0, 0), (1, 1), (1, 1)), mode="reflect")

    def conv(z, w, b):
        y = jax.lax.conv_general_dilated(
            z, w, (1, 1), "VALID",
            dimension_numbers=("NCHW", "OIHW", "NCHW"))
        return y + b[None, :, None, None]

    def inorm(z):
        m = z.mean(axis=(2, 3), keepdims=True)
        v = ((z - m) ** 2).mean(axis=(2, 3), keepdims=True)
        return (z - m) * jax.lax.rsqrt(v + EPS)

    h = jax.nn.relu(inorm(conv(refl_pad(x), w1, b1)))
    h = inorm(conv(refl_pad(h), w2, b2))
    return x + h


if __name__ == "__main__":
    N, C, H, W = 2, 4, 16, 16
    key = jax.random.PRNGKey(0)
    kx, kw1, kb1, kw2, kb2 = jax.random.split(key, 5)

    x = jax.random.normal(kx, (N, C, H, W), dtype=jnp.float32)
    # Deterministic synthetic parameters (Conv2d weight shape: (C, C, 3, 3)).
    w1 = jax.random.normal(kw1, (C, C, 3, 3), dtype=jnp.float32) * 0.1
    b1 = jax.random.normal(kb1, (C,), dtype=jnp.float32) * 0.1
    w2 = jax.random.normal(kw2, (C, C, 3, 3), dtype=jnp.float32) * 0.1
    b2 = jax.random.normal(kb2, (C,), dtype=jnp.float32) * 0.1

    y_ref = _ref_forward(x, w1, b1, w2, b2)

    # 1) f32 compute path: tight check against the reference.
    y32 = jax.block_until_ready(
        residual_block_nchw(x, w1, b1, w2, b2, compute_dtype=jnp.float32))
    assert y32.shape == (N, C, H, W)
    assert jnp.allclose(y32, y_ref, atol=2e-2, rtol=2e-2), (
        float(jnp.max(jnp.abs(y32 - y_ref))))

    # 2) Default (generation-dependent) operand dtype: looser check.
    y = jax.block_until_ready(residual_block_nchw(x, w1, b1, w2, b2))
    assert y.shape == (N, C, H, W)
    assert jnp.allclose(y, y_ref, atol=1e-1, rtol=1e-1), (
        float(jnp.max(jnp.abs(y - y_ref))))

    print("KERNEL_OK")
</pallas_src>

<mosaic_0001>
module attributes {stable_mosaic.version = 11 : i64} {
  func.func @_residual_block_kernel(%arg0: i32, %arg1: memref<1x4x256xf32, #tpu.memory_space<vmem>>, %arg2: memref<4x36xf32, #tpu.memory_space<vmem>>, %arg3: memref<4x1xf32, #tpu.memory_space<vmem>>, %arg4: memref<4x36xf32, #tpu.memory_space<vmem>>, %arg5: memref<4x1xf32, #tpu.memory_space<vmem>>, %arg6: memref<1x4x256xf32, #tpu.memory_space<vmem>>, %arg7: memref<36x256xf32, #tpu.memory_space<vmem>>) attributes {dimension_semantics = [#tpu.dimension_semantics<parallel>], iteration_bounds = array<i64: 2>, scalar_prefetch = 0 : i64, scratch_operands = 1 : i64, tpu.core_type = #tpu.core_type<tc>, window_params = [{transform_indices = @transform_0, window_bounds = array<i64: 1, 4, 256>}, {pipeline_mode = #tpu.pipeline_mode<synchronous>, transform_indices = @transform_1, window_bounds = array<i64: 4, 36>}, {pipeline_mode = #tpu.pipeline_mode<synchronous>, transform_indices = @transform_2, window_bounds = array<i64: 4, 1>}, {pipeline_mode = #tpu.pipeline_mode<synchronous>, transform_indices = @transform_3, window_bounds = array<i64: 4, 36>}, {pipeline_mode = #tpu.pipeline_mode<synchronous>, transform_indices = @transform_4, window_bounds = array<i64: 4, 1>}, {transform_indices = @transform_5, window_bounds = array<i64: 1, 4, 256>}]} {
    %0 = tpu.iota {dimensions = array<i32: 1>} : vector<4x256xi32>
    %c15_i32 = arith.constant 15 : i32
    %1 = vector.broadcast %c15_i32 : i32 to vector<4x256xi32>
    %2 = arith.andi %0, %1 : vector<4x256xi32>
    %c0_i32 = arith.constant 0 : i32
    %3 = vector.broadcast %c0_i32 : i32 to vector<4x256xi32>
    %4 = arith.cmpi eq, %2, %3 : vector<4x256xi32>
    %c15_i32_0 = arith.constant 15 : i32
    %5 = vector.broadcast %c15_i32_0 : i32 to vector<4x256xi32>
    %6 = arith.cmpi eq, %2, %5 : vector<4x256xi32>
    %c16_i32 = arith.constant 16 : i32
    %7 = vector.broadcast %c16_i32 : i32 to vector<4x256xi32>
    %8 = arith.cmpi slt, %0, %7 : vector<4x256xi32>
    %c240_i32 = arith.constant 240 : i32
    %9 = vector.broadcast %c240_i32 : i32 to vector<4x256xi32>
    %10 = arith.cmpi sge, %0, %9 : vector<4x256xi32>
    %c0 = arith.constant 0 : index
    %c0_1 = arith.constant 0 : index
    %c0_2 = arith.constant 0 : index
    %11 = vector.load %arg1[%c0, %c0_1, %c0_2] : memref<1x4x256xf32, #tpu.memory_space<vmem>>, vector<1x4x256xf32>
    %12 = vector.shape_cast %11 : vector<1x4x256xf32> to vector<4x256xf32>
    %13 = vector.extract_strided_slice %12 {offsets = [0, 16], sizes = [4, 240], strides = [1, 1]} : vector<4x256xf32> to vector<4x240xf32>
    %14 = vector.extract_strided_slice %12 {offsets = [0, 0], sizes = [4, 16], strides = [1, 1]} : vector<4x256xf32> to vector<4x16xf32>
    %15 = tpu.concatenate %13, %14 in 1 : vector<4x240xf32>, vector<4x16xf32> -> vector<4x256xf32>
    %16 = vector.extract_strided_slice %12 {offsets = [0, 240], sizes = [4, 16], strides = [1, 1]} : vector<4x256xf32> to vector<4x16xf32>
    %17 = vector.extract_strided_slice %12 {offsets = [0, 0], sizes = [4, 240], strides = [1, 1]} : vector<4x256xf32> to vector<4x240xf32>
    %18 = tpu.concatenate %16, %17 in 1 : vector<4x16xf32>, vector<4x240xf32> -> vector<4x256xf32>
    %19 = arith.select %8, %15, %18 : vector<4x256xi1>, vector<4x256xf32>
    %20 = arith.select %10, %18, %15 : vector<4x256xi1>, vector<4x256xf32>
    %21 = vector.extract_strided_slice %19 {offsets = [0, 1], sizes = [4, 255], strides = [1, 1]} : vector<4x256xf32> to vector<4x255xf32>
    %22 = vector.extract_strided_slice %19 {offsets = [0, 0], sizes = [4, 1], strides = [1, 1]} : vector<4x256xf32> to vector<4x1xf32>
    %23 = tpu.concatenate %21, %22 in 1 : vector<4x255xf32>, vector<4x1xf32> -> vector<4x256xf32>
    %24 = vector.extract_strided_slice %19 {offsets = [0, 255], sizes = [4, 1], strides = [1, 1]} : vector<4x256xf32> to vector<4x1xf32>
    %25 = vector.extract_strided_slice %19 {offsets = [0, 0], sizes = [4, 255], strides = [1, 1]} : vector<4x256xf32> to vector<4x255xf32>
    %26 = tpu.concatenate %24, %25 in 1 : vector<4x1xf32>, vector<4x255xf32> -> vector<4x256xf32>
    %27 = arith.select %4, %23, %26 : vector<4x256xi1>, vector<4x256xf32>
    %28 = arith.select %6, %26, %23 : vector<4x256xi1>, vector<4x256xf32>
    %c0_3 = arith.constant 0 : index
    %c0_4 = arith.constant 0 : index
    %29 = vector.load %arg7[%c0_3, %c0_4] : memref<36x256xf32, #tpu.memory_space<vmem>>, vector<4x256xf32>
    tpu.vector_store %arg7[%c0_3, %c0_4], %27 {strides = array<i32>} : memref<36x256xf32, #tpu.memory_space<vmem>>, vector<4x256xf32>,
    %c4 = arith.constant 4 : index
    %c0_5 = arith.constant 0 : index
    %30 = vector.load %arg7[%c4, %c0_5] : memref<36x256xf32, #tpu.memory_space<vmem>>, vector<4x256xf32>
    tpu.vector_store %arg7[%c4, %c0_5], %19 {strides = array<i32>} : memref<36x256xf32, #tpu.memory_space<vmem>>, vector<4x256xf32>,
    %c8 = arith.constant 8 : index
    %c0_6 = arith.constant 0 : index
    %31 = vector.load %arg7[%c8, %c0_6] : memref<36x256xf32, #tpu.memory_space<vmem>>, vector<4x256xf32>
    tpu.vector_store %arg7[%c8, %c0_6], %28 {strides = array<i32>} : memref<36x256xf32, #tpu.memory_space<vmem>>, vector<4x256xf32>,
    %32 = vector.extract_strided_slice %12 {offsets = [0, 1], sizes = [4, 255], strides = [1, 1]} : vector<4x256xf32> to vector<4x255xf32>
    %33 = vector.extract_strided_slice %12 {offsets = [0, 0], sizes = [4, 1], strides = [1, 1]} : vector<4x256xf32> to vector<4x1xf32>
    %34 = tpu.concatenate %32, %33 in 1 : vector<4x255xf32>, vector<4x1xf32> -> vector<4x256xf32>
    %35 = vector.extract_strided_slice %12 {offsets = [0, 255], sizes = [4, 1], strides = [1, 1]} : vector<4x256xf32> to vector<4x1xf32>
    %36 = vector.extract_strided_slice %12 {offsets = [0, 0], sizes = [4, 255], strides = [1, 1]} : vector<4x256xf32> to vector<4x255xf32>
    %37 = tpu.concatenate %35, %36 in 1 : vector<4x1xf32>, vector<4x255xf32> -> vector<4x256xf32>
    %38 = arith.select %4, %34, %37 : vector<4x256xi1>, vector<4x256xf32>
    %39 = arith.select %6, %37, %34 : vector<4x256xi1>, vector<4x256xf32>
    %c12 = arith.constant 12 : index
    %c0_7 = arith.constant 0 : index
    %40 = vector.load %arg7[%c12, %c0_7] : memref<36x256xf32, #tpu.memory_space<vmem>>, vector<4x256xf32>
    tpu.vector_store %arg7[%c12, %c0_7], %38 {strides = array<i32>} : memref<36x256xf32, #tpu.memory_space<vmem>>, vector<4x256xf32>,
    %c16 = arith.constant 16 : index
    %c0_8 = arith.constant 0 : index
    %41 = vector.load %arg7[%c16, %c0_8] : memref<36x256xf32, #tpu.memory_space<vmem>>, vector<4x256xf32>
    tpu.vector_store %arg7[%c16, %c0_8], %12 {strides = array<i32>} : memref<36x256xf32, #tpu.memory_space<vmem>>, vector<4x256xf32>,
    %c20 = arith.constant 20 : index
    %c0_9 = arith.constant 0 : index
    %42 = vector.load %arg7[%c20, %c0_9] : memref<36x256xf32, #tpu.memory_space<vmem>>, vector<4x256xf32>
    tpu.vector_store %arg7[%c20, %c0_9], %39 {strides = array<i32>} : memref<36x256xf32, #tpu.memory_space<vmem>>, vector<4x256xf32>,
    %43 = vector.extract_strided_slice %20 {offsets = [0, 1], sizes = [4, 255], strides = [1, 1]} : vector<4x256xf32> to vector<4x255xf32>
    %44 = vector.extract_strided_slice %20 {offsets = [0, 0], sizes = [4, 1], strides = [1, 1]} : vector<4x256xf32> to vector<4x1xf32>
    %45 = tpu.concatenate %43, %44 in 1 : vector<4x255xf32>, vector<4x1xf32> -> vector<4x256xf32>
    %46 = vector.extract_strided_slice %20 {offsets = [0, 255], sizes = [4, 1], strides = [1, 1]} : vector<4x256xf32> to vector<4x1xf32>
    %47 = vector.extract_strided_slice %20 {offsets = [0, 0], sizes = [4, 255], strides = [1, 1]} : vector<4x256xf32> to vector<4x255xf32>
    %48 = tpu.concatenate %46, %47 in 1 : vector<4x1xf32>, vector<4x255xf32> -> vector<4x256xf32>
    %49 = arith.select %4, %45, %48 : vector<4x256xi1>, vector<4x256xf32>
    %50 = arith.select %6, %48, %45 : vector<4x256xi1>, vector<4x256xf32>
    %c24 = arith.constant 24 : index
    %c0_10 = arith.constant 0 : index
    %51 = vector.load %arg7[%c24, %c0_10] : memref<36x256xf32, #tpu.memory_space<vmem>>, vector<4x256xf32>
    tpu.vector_store %arg7[%c24, %c0_10], %49 {strides = array<i32>} : memref<36x256xf32, #tpu.memory_space<vmem>>, vector<4x256xf32>,
    %c28 = arith.constant 28 : index
    %c0_11 = arith.constant 0 : index
    %52 = vector.load %arg7[%c28, %c0_11] : memref<36x256xf32, #tpu.memory_space<vmem>>, vector<4x256xf32>
    tpu.vector_store %arg7[%c28, %c0_11], %20 {strides = array<i32>} : memref<36x256xf32, #tpu.memory_space<vmem>>, vector<4x256xf32>,
    %c32 = arith.constant 32 : index
    %c0_12 = arith.constant 0 : index
    %53 = vector.load %arg7[%c32, %c0_12] : memref<36x256xf32, #tpu.memory_space<vmem>>, vector<4x256xf32>
    tpu.vector_store %arg7[%c32, %c0_12], %50 {strides = array<i32>} : memref<36x256xf32, #tpu.memory_space<vmem>>, vector<4x256xf32>,
    %c0_13 = arith.constant 0 : index
    %c0_14 = arith.constant 0 : index
    %54 = vector.load %arg2[%c0_13, %c0_14] : memref<4x36xf32, #tpu.memory_space<vmem>>, vector<4x36xf32>
    %c0_15 = arith.constant 0 : index
    %c0_16 = arith.constant 0 : index
    %55 = vector.load %arg7[%c0_15, %c0_16] : memref<36x256xf32, #tpu.memory_space<vmem>>, vector<36x256xf32>
    %cst = arith.constant dense<0.000000e+00> : vector<4x256xf32>
    %56 = tpu.matmul %54, %55, %cst {dimension_numbers = #tpu.dot_dimension_numbers<[1], [0], [0], [1], [0, 0, 1, 1], [], []>} : vector<4x36xf32>, vector<36x256xf32>, vector<4x256xf32> -> vector<4x256xf32>
    %c0_17 = arith.constant 0 : index
    %c0_18 = arith.constant 0 : index
    %57 = vector.load %arg3[%c0_17, %c0_18] : memref<4x1xf32, #tpu.memory_space<vmem>>, vector<4x1xf32>
    %58 = vector.broadcast %57 : vector<4x1xf32> to vector<4x256xf32>
    %59 = arith.addf %56, %58 : vector<4x256xf32>
    %cst_19 = arith.constant dense<0.000000e+00> : vector<4xf32>
    %60 = vector.multi_reduction <add>, %59, %cst_19 [1] : vector<4x256xf32> to vector<4xf32>
    %61 = vector.shape_cast %60 : vector<4xf32> to vector<4x1xf32>
    %cst_20 = arith.constant 3.906250e-03 : f32
    %62 = vector.broadcast %cst_20 : f32 to vector<4x1xf32>
    %63 = arith.mulf %61, %62 : vector<4x1xf32>
    %64 = vector.broadcast %63 : vector<4x1xf32> to vector<4x256xf32>
    %65 = arith.subf %59, %64 : vector<4x256xf32>
    %66 = arith.mulf %65, %65 : vector<4x256xf32>
    %cst_21 = arith.constant dense<0.000000e+00> : vector<4xf32>
    %67 = vector.multi_reduction <add>, %66, %cst_21 [1] : vector<4x256xf32> to vector<4xf32>
    %68 = vector.shape_cast %67 : vector<4xf32> to vector<4x1xf32>
    %cst_22 = arith.constant 3.906250e-03 : f32
    %69 = vector.broadcast %cst_22 : f32 to vector<4x1xf32>
    %70 = arith.mulf %68, %69 : vector<4x1xf32>
    %cst_23 = arith.constant 9.99999974E-6 : f32
    %71 = vector.broadcast %cst_23 : f32 to vector<4x1xf32>
    %72 = arith.addf %70, %71 : vector<4x1xf32>
    %73 = math.rsqrt %72 : vector<4x1xf32>
    %74 = vector.broadcast %73 : vector<4x1xf32> to vector<4x256xf32>
    %75 = arith.mulf %65, %74 : vector<4x256xf32>
    %cst_24 = arith.constant 0.000000e+00 : f32
    %76 = vector.broadcast %cst_24 : f32 to vector<4x256xf32>
    %77 = arith.maximumf %75, %76 : vector<4x256xf32>
    %78 = vector.extract_strided_slice %77 {offsets = [0, 16], sizes = [4, 240], strides = [1, 1]} : vector<4x256xf32> to vector<4x240xf32>
    %79 = vector.extract_strided_slice %77 {offsets = [0, 0], sizes = [4, 16], strides = [1, 1]} : vector<4x256xf32> to vector<4x16xf32>
    %80 = tpu.concatenate %78, %79 in 1 : vector<4x240xf32>, vector<4x16xf32> -> vector<4x256xf32>
    %81 = vector.extract_strided_slice %77 {offsets = [0, 240], sizes = [4, 16], strides = [1, 1]} : vector<4x256xf32> to vector<4x16xf32>
    %82 = vector.extract_strided_slice %77 {offsets = [0, 0], sizes = [4, 240], strides = [1, 1]} : vector<4x256xf32> to vector<4x240xf32>
    %83 = tpu.concatenate %81, %82 in 1 : vector<4x16xf32>, vector<4x240xf32> -> vector<4x256xf32>
    %84 = arith.select %8, %80, %83 : vector<4x256xi1>, vector<4x256xf32>
    %85 = arith.select %10, %83, %80 : vector<4x256xi1>, vector<4x256xf32>
    %86 = vector.extract_strided_slice %84 {offsets = [0, 1], sizes = [4, 255], strides = [1, 1]} : vector<4x256xf32> to vector<4x255xf32>
    %87 = vector.extract_strided_slice %84 {offsets = [0, 0], sizes = [4, 1], strides = [1, 1]} : vector<4x256xf32> to vector<4x1xf32>
    %88 = tpu.concatenate %86, %87 in 1 : vector<4x255xf32>, vector<4x1xf32> -> vector<4x256xf32>
    %89 = vector.extract_strided_slice %84 {offsets = [0, 255], sizes = [4, 1], strides = [1, 1]} : vector<4x256xf32> to vector<4x1xf32>
    %90 = vector.extract_strided_slice %84 {offsets = [0, 0], sizes = [4, 255], strides = [1, 1]} : vector<4x256xf32> to vector<4x255xf32>
    %91 = tpu.concatenate %89, %90 in 1 : vector<4x1xf32>, vector<4x255xf32> -> vector<4x256xf32>
    %92 = arith.select %4, %88, %91 : vector<4x256xi1>, vector<4x256xf32>
    %93 = arith.select %6, %91, %88 : vector<4x256xi1>, vector<4x256xf32>
    %c0_25 = arith.constant 0 : index
    %c0_26 = arith.constant 0 : index
    %94 = vector.load %arg7[%c0_25, %c0_26] : memref<36x256xf32, #tpu.memory_space<vmem>>, vector<4x256xf32>
    tpu.vector_store %arg7[%c0_25, %c0_26], %92 {strides = array<i32>} : memref<36x256xf32, #tpu.memory_space<vmem>>, vector<4x256xf32>,
    %c4_27 = arith.constant 4 : index
    %c0_28 = arith.constant 0 : index
    %95 = vector.load %arg7[%c4_27, %c0_28] : memref<36x256xf32, #tpu.memory_space<vmem>>, vector<4x256xf32>
    tpu.vector_store %arg7[%c4_27, %c0_28], %84 {strides = array<i32>} : memref<36x256xf32, #tpu.memory_space<vmem>>, vector<4x256xf32>,
    %c8_29 = arith.constant 8 : index
    %c0_30 = arith.constant 0 : index
    %96 = vector.load %arg7[%c8_29, %c0_30] : memref<36x256xf32, #tpu.memory_space<vmem>>, vector<4x256xf32>
    tpu.vector_store %arg7[%c8_29, %c0_30], %93 {strides = array<i32>} : memref<36x256xf32, #tpu.memory_space<vmem>>, vector<4x256xf32>,
    %97 = vector.extract_strided_slice %77 {offsets = [0, 1], sizes = [4, 255], strides = [1, 1]} : vector<4x256xf32> to vector<4x255xf32>
    %98 = vector.extract_strided_slice %77 {offsets = [0, 0], sizes = [4, 1], strides = [1, 1]} : vector<4x256xf32> to vector<4x1xf32>
    %99 = tpu.concatenate %97, %98 in 1 : vector<4x255xf32>, vector<4x1xf32> -> vector<4x256xf32>
    %100 = vector.extract_strided_slice %77 {offsets = [0, 255], sizes = [4, 1], strides = [1, 1]} : vector<4x256xf32> to vector<4x1xf32>
    %101 = vector.extract_strided_slice %77 {offsets = [0, 0], sizes = [4, 255], strides = [1, 1]} : vector<4x256xf32> to vector<4x255xf32>
    %102 = tpu.concatenate %100, %101 in 1 : vector<4x1xf32>, vector<4x255xf32> -> vector<4x256xf32>
    %103 = arith.select %4, %99, %102 : vector<4x256xi1>, vector<4x256xf32>
    %104 = arith.select %6, %102, %99 : vector<4x256xi1>, vector<4x256xf32>
    %c12_31 = arith.constant 12 : index
    %c0_32 = arith.constant 0 : index
    %105 = vector.load %arg7[%c12_31, %c0_32] : memref<36x256xf32, #tpu.memory_space<vmem>>, vector<4x256xf32>
    tpu.vector_store %arg7[%c12_31, %c0_32], %103 {strides = array<i32>} : memref<36x256xf32, #tpu.memory_space<vmem>>, vector<4x256xf32>,
    %c16_33 = arith.constant 16 : index
    %c0_34 = arith.constant 0 : index
    %106 = vector.load %arg7[%c16_33, %c0_34] : memref<36x256xf32, #tpu.memory_space<vmem>>, vector<4x256xf32>
    tpu.vector_store %arg7[%c16_33, %c0_34], %77 {strides = array<i32>} : memref<36x256xf32, #tpu.memory_space<vmem>>, vector<4x256xf32>,
    %c20_35 = arith.constant 20 : index
    %c0_36 = arith.constant 0 : index
    %107 = vector.load %arg7[%c20_35, %c0_36] : memref<36x256xf32, #tpu.memory_space<vmem>>, vector<4x256xf32>
    tpu.vector_store %arg7[%c20_35, %c0_36], %104 {strides = array<i32>} : memref<36x256xf32, #tpu.memory_space<vmem>>, vector<4x256xf32>,
    %108 = vector.extract_strided_slice %85 {offsets = [0, 1], sizes = [4, 255], strides = [1, 1]} : vector<4x256xf32> to vector<4x255xf32>
    %109 = vector.extract_strided_slice %85 {offsets = [0, 0], sizes = [4, 1], strides = [1, 1]} : vector<4x256xf32> to vector<4x1xf32>
    %110 = tpu.concatenate %108, %109 in 1 : vector<4x255xf32>, vector<4x1xf32> -> vector<4x256xf32>
    %111 = vector.extract_strided_slice %85 {offsets = [0, 255], sizes = [4, 1], strides = [1, 1]} : vector<4x256xf32> to vector<4x1xf32>
    %112 = vector.extract_strided_slice %85 {offsets = [0, 0], sizes = [4, 255], strides = [1, 1]} : vector<4x256xf32> to vector<4x255xf32>
    %113 = tpu.concatenate %111, %112 in 1 : vector<4x1xf32>, vector<4x255xf32> -> vector<4x256xf32>
    %114 = arith.select %4, %110, %113 : vector<4x256xi1>, vector<4x256xf32>
    %115 = arith.select %6, %113, %110 : vector<4x256xi1>, vector<4x256xf32>
    %c24_37 = arith.constant 24 : index
    %c0_38 = arith.constant 0 : index
    %116 = vector.load %arg7[%c24_37, %c0_38] : memref<36x256xf32, #tpu.memory_space<vmem>>, vector<4x256xf32>
    tpu.vector_store %arg7[%c24_37, %c0_38], %114 {strides = array<i32>} : memref<36x256xf32, #tpu.memory_space<vmem>>, vector<4x256xf32>,
    %c28_39 = arith.constant 28 : index
    %c0_40 = arith.constant 0 : index
    %117 = vector.load %arg7[%c28_39, %c0_40] : memref<36x256xf32, #tpu.memory_space<vmem>>, vector<4x256xf32>
    tpu.vector_store %arg7[%c28_39, %c0_40], %85 {strides = array<i32>} : memref<36x256xf32, #tpu.memory_space<vmem>>, vector<4x256xf32>,
    %c32_41 = arith.constant 32 : index
    %c0_42 = arith.constant 0 : index
    %118 = vector.load %arg7[%c32_41, %c0_42] : memref<36x256xf32, #tpu.memory_space<vmem>>, vector<4x256xf32>
    tpu.vector_store %arg7[%c32_41, %c0_42], %115 {strides = array<i32>} : memref<36x256xf32, #tpu.memory_space<vmem>>, vector<4x256xf32>,
    %c0_43 = arith.constant 0 : index
    %c0_44 = arith.constant 0 : index
    %119 = vector.load %arg4[%c0_43, %c0_44] : memref<4x36xf32, #tpu.memory_space<vmem>>, vector<4x36xf32>
    %c0_45 = arith.constant 0 : index
    %c0_46 = arith.constant 0 : index
    %120 = vector.load %arg7[%c0_45, %c0_46] : memref<36x256xf32, #tpu.memory_space<vmem>>, vector<36x256xf32>
    %cst_47 = arith.constant dense<0.000000e+00> : vector<4x256xf32>
    %121 = tpu.matmul %119, %120, %cst_47 {dimension_numbers = #tpu.dot_dimension_numbers<[1], [0], [0], [1], [0, 0, 1, 1], [], []>} : vector<4x36xf32>, vector<36x256xf32>, vector<4x256xf32> -> vector<4x256xf32>
    %c0_48 = arith.constant 0 : index
    %c0_49 = arith.constant 0 : index
    %122 = vector.load %arg5[%c0_48, %c0_49] : memref<4x1xf32, #tpu.memory_space<vmem>>, vector<4x1xf32>
    %123 = vector.broadcast %122 : vector<4x1xf32> to vector<4x256xf32>
    %124 = arith.addf %121, %123 : vector<4x256xf32>
    %cst_50 = arith.constant dense<0.000000e+00> : vector<4xf32>
    %125 = vector.multi_reduction <add>, %124, %cst_50 [1] : vector<4x256xf32> to vector<4xf32>
    %126 = vector.shape_cast %125 : vector<4xf32> to vector<4x1xf32>
    %cst_51 = arith.constant 3.906250e-03 : f32
    %127 = vector.broadcast %cst_51 : f32 to vector<4x1xf32>
    %128 = arith.mulf %126, %127 : vector<4x1xf32>
    %129 = vector.broadcast %128 : vector<4x1xf32> to vector<4x256xf32>
    %130 = arith.subf %124, %129 : vector<4x256xf32>
    %131 = arith.mulf %130, %130 : vector<4x256xf32>
    %cst_52 = arith.constant dense<0.000000e+00> : vector<4xf32>
    %132 = vector.multi_reduction <add>, %131, %cst_52 [1] : vector<4x256xf32> to vector<4xf32>
    %133 = vector.shape_cast %132 : vector<4xf32> to vector<4x1xf32>
    %cst_53 = arith.constant 3.906250e-03 : f32
    %134 = vector.broadcast %cst_53 : f32 to vector<4x1xf32>
    %135 = arith.mulf %133, %134 : vector<4x1xf32>
    %cst_54 = arith.constant 9.99999974E-6 : f32
    %136 = vector.broadcast %cst_54 : f32 to vector<4x1xf32>
    %137 = arith.addf %135, %136 : vector<4x1xf32>
    %138 = math.rsqrt %137 : vector<4x1xf32>
    %139 = vector.broadcast %138 : vector<4x1xf32> to vector<4x256xf32>
    %140 = arith.mulf %130, %139 : vector<4x256xf32>
    %141 = arith.addf %12, %140 : vector<4x256xf32>
    %c0_55 = arith.constant 0 : index
    %c0_56 = arith.constant 0 : index
    %c0_57 = arith.constant 0 : index
    %142 = vector.load %arg6[%c0_55, %c0_56, %c0_57] : memref<1x4x256xf32, #tpu.memory_space<vmem>>, vector<1x4x256xf32>
    %143 = vector.shape_cast %142 : vector<1x4x256xf32> to vector<4x256xf32>
    %144 = vector.shape_cast %141 : vector<4x256xf32> to vector<1x4x256xf32>
    tpu.vector_store %arg6[%c0_55, %c0_56, %c0_57], %144 {strides = array<i32>} : memref<1x4x256xf32, #tpu.memory_space<vmem>>, vector<1x4x256xf32>,
    return
  }
  func.func @transform_0(%arg0: i32) -> (i32, i32, i32) {
    %c0_i32 = arith.constant 0 : i32
    %c0_i32_0 = arith.constant 0 : i32
    %c0_i32_1 = arith.constant 0 : i32
    return %arg0, %c0_i32, %c0_i32_0 : i32, i32, i32
  }
  func.func @transform_1(%arg0: i32) -> (i32, i32) {
    %c0_i32 = arith.constant 0 : i32
    %c0_i32_0 = arith.constant 0 : i32
    %c0_i32_1 = arith.constant 0 : i32
    return %c0_i32, %c0_i32_0 : i32, i32
  }
  func.func @transform_2(%arg0: i32) -> (i32, i32) {
    %c0_i32 = arith.constant 0 : i32
    %c0_i32_0 = arith.constant 0 : i32
    %c0_i32_1 = arith.constant 0 : i32
    return %c0_i32, %c0_i32_0 : i32, i32
  }
  func.func @transform_3(%arg0: i32) -> (i32, i32) {
    %c0_i32 = arith.constant 0 : i32
    %c0_i32_0 = arith.constant 0 : i32
    %c0_i32_1 = arith.constant 0 : i32
    return %c0_i32, %c0_i32_0 : i32, i32
  }
  func.func @transform_4(%arg0: i32) -> (i32, i32) {
    %c0_i32 = arith.constant 0 : i32
    %c0_i32_0 = arith.constant 0 : i32
    %c0_i32_1 = arith.constant 0 : i32
    return %c0_i32, %c0_i32_0 : i32, i32
  }
  func.func @transform_5(%arg0: i32) -> (i32, i32, i32) {
    %c0_i32 = arith.constant 0 : i32
    %c0_i32_0 = arith.constant 0 : i32
    %c0_i32_1 = arith.constant 0 : i32
    return %arg0, %c0_i32, %c0_i32_0 : i32, i32, i32
  }
}

</mosaic_0001>

<llo_original>
// kernel: tpu_custom_call.1
$region0: #{tpu_custom_call.1}
  #allocation0 [shape = 'u32[]', space=smem, size = 0x4, offset = 0x4, fixed_abs, tag = 'smem constant byte address 0x4 - core index']
  #allocation1 [shape = 'u32[144,128]{1,0:T(1,128)}', space=vmem, size = 0x12000, scoped, tag = 'internal scratch']
  #allocation2 [shape = 'f32[36,256]{1,0:T(8,128)}', space=vmem, size = 0xa000, scoped, tag = 'scratch operand']
  %s0 = inlined_call_operand.hbm [shape: f32[2,4,256], index: 0, kind: input, shape index: {}]
  %s1 = inlined_call_operand.vmem [shape: f32[4,36], index: 1, kind: input, shape index: {}]
  %s2 = inlined_call_operand.vmem [shape: f32[4,1], index: 2, kind: input, shape index: {}]
  %s3 = inlined_call_operand.vmem [shape: f32[4,36], index: 3, kind: input, shape index: {}]
  %s4 = inlined_call_operand.vmem [shape: f32[4,1], index: 4, kind: input, shape index: {}]
  %s5 = inlined_call_operand.hbm [shape: f32[2,4,256], index: 5, kind: output, shape index: {}]
  %s6 = sld [smem:[#allocation0]]
  $region57: #{tpu_custom_call.1} parent=0
    _
  %s8 = ssub.s32 1, %s6
  %s9 = scalar_select 0, %s8, %s6
  $region1: #{tpu_custom_call.1} parent=0
    #allocation3 [shape = 'u8[8192]{0}', space=vmem, size = 0x2000, scoped, tag = 'input window, operand 0']
    #allocation4 [shape = 's32[2]{0}', space=sflag, size = 0x8, scoped, tag = 'scoped memory for tpu_custom_call.1']
    #allocation5 [shape = 's32[2]{0}', space=sflag, size = 0x8, scoped, tag = 'scoped memory for tpu_custom_call.1']
    #allocation6 [shape = 'u8[8192]{0}', space=vmem, size = 0x2000, scoped, tag = 'output window, operand 0']
    %10 = vsyncpa [#allocation4], 0
    %s11 = scalar_lea.sflag [#allocation4], 1
    %12 = vsyncpa %s11, 0
    %13 = vsyncpa [#allocation5], 0
    %s14 = scalar_lea.sflag [#allocation5], 1
    %15 = vsyncpa %s14, 0
    loop: start=0, step=1, limit=4
    $region2: #{tpu_custom_call.1} parent=1 // loop_pre_header
      _
    $region3: #{tpu_custom_call.1} parent=1 // loop_header
      %s17 = sphi 0, %s21
      %p18 = scmp.ge.s32.totalorder %s17, 4
      %s27 = sphi 0, %s29
      %s30 = sphi 0, %s27
      %s31 = sphi 0, %s30
      %s47 = sphi 0, %s31
      %s51 = sphi 0, %s51
      %s53 = sphi 0, %s51
      %s54 = sphi 0, %s53
      %s68 = sphi 0, %s54
      %s72 = sphi 0, %s72
      %s74 = sphi 0, %s72
      %s75 = sphi 0, %s74
      %s89 = sphi 0, %s75
      %s93 = sphi 0, %s93
      %s95 = sphi 0, %s93
      %s96 = sphi 0, %s95
      %s110 = sphi 0, %s96
      %s114 = sphi 0, %s114
      %s116 = sphi 0, %s114
      %s117 = sphi 0, %s116
      %s131 = sphi 0, %s117
      %s137 = sphi 0, %s139
      %s140 = sphi 0, %s137
      %s141 = sphi 0, %s140
      %s157 = sphi 0, %s141
    $region4: #{tpu_custom_call.1} parent=1 // loop_header_branch
      %20 = sbr.rel (%p18) target = $region8
    $region5: #{tpu_custom_call.1} parent=1 // loop_body
      %s22 = ssub.s32 %s17, 1
      %s23 = ssub.s32 %s17, 2
      %s24 = sadd.s32 %s17, 1
      %s25 = ssub.s32 %s17, %s24
      %p26 = scmp.eq.s32.totalorder %s25, 0
      %s28 = sadd.s32 %s27, 1
      %s29 = scalar_select %p26, %s27, %s28
      %p32 = pneg %p26
      %p33 = scmp.eq.s32.totalorder %s17, 1
      %p34 = por %p32, %p33
      %p35 = scmp.ne.s32.totalorder %s27, %s30
      %p36 = scmp.eq.s32.totalorder %s17, 0
      %p37 = por %p35, %p36
      %p38 = scmp.ne.s32.totalorder %s27, %s30
      %p39 = scmp.eq.s32.totalorder %s22, 1
      %p40 = por %p38, %p39
      %p41 = scmp.ne.s32.totalorder %s30, %s31
      %p42 = scmp.eq.s32.totalorder %s22, 0
      %p43 = por %p41, %p42
      %p44 = scmp.ne.s32.totalorder %s30, %s31
      %p45 = scmp.eq.s32.totalorder %s23, 1
      %p46 = por %p44, %p45
      %p48 = scmp.ne.s32.totalorder %s31, %s47
      %p49 = scmp.eq.s32.totalorder %s23, 0
      %p50 = por %p48, %p49
      %s52 = sadd.s32 %s51, 1
      %p55 = scmp.eq.s32.totalorder %s17, 1
      %p56 = scmp.ne.s32.totalorder %s51, %s53
      %p57 = scmp.eq.s32.totalorder %s17, 0
      %p58 = por %p56, %p57
      %p59 = scmp.ne.s32.totalorder %s51, %s53
      %p60 = scmp.eq.s32.totalorder %s22, 1
      %p61 = por %p59, %p60
      %p62 = scmp.ne.s32.totalorder %s53, %s54
      %p63 = scmp.eq.s32.totalorder %s22, 0
      %p64 = por %p62, %p63
      %p65 = scmp.ne.s32.totalorder %s53, %s54
      %p66 = scmp.eq.s32.totalorder %s23, 1
      %p67 = por %p65, %p66
      %p69 = scmp.ne.s32.totalorder %s54, %s68
      %p70 = scmp.eq.s32.totalorder %s23, 0
      %p71 = por %p69, %p70
      %s73 = sadd.s32 %s72, 1
      %p76 = scmp.eq.s32.totalorder %s17, 1
      %p77 = scmp.ne.s32.totalorder %s72, %s74
      %p78 = scmp.eq.s32.totalorder %s17, 0
      %p79 = por %p77, %p78
      %p80 = scmp.ne.s32.totalorder %s72, %s74
      %p81 = scmp.eq.s32.totalorder %s22, 1
      %p82 = por %p80, %p81
      %p83 = scmp.ne.s32.totalorder %s74, %s75
      %p84 = scmp.eq.s32.totalorder %s22, 0
      %p85 = por %p83, %p84
      %p86 = scmp.ne.s32.totalorder %s74, %s75
      %p87 = scmp.eq.s32.totalorder %s23, 1
      %p88 = por %p86, %p87
      %p90 = scmp.ne.s32.totalorder %s75, %s89
      %p91 = scmp.eq.s32.totalorder %s23, 0
      %p92 = por %p90, %p91
      %s94 = sadd.s32 %s93, 1
      %p97 = scmp.eq.s32.totalorder %s17, 1
      %p98 = scmp.ne.s32.totalorder %s93, %s95
      %p99 = scmp.eq.s32.totalorder %s17, 0
      %p100 = por %p98, %p99
      %p101 = scmp.ne.s32.totalorder %s93, %s95
      %p102 = scmp.eq.s32.totalorder %s22, 1
      %p103 = por %p101, %p102
      %p104 = scmp.ne.s32.totalorder %s95, %s96
      %p105 = scmp.eq.s32.totalorder %s22, 0
      %p106 = por %p104, %p105
      %p107 = scmp.ne.s32.totalorder %s95, %s96
      %p108 = scmp.eq.s32.totalorder %s23, 1
      %p109 = por %p107, %p108
      %p111 = scmp.ne.s32.totalorder %s96, %s110
      %p112 = scmp.eq.s32.totalorder %s23, 0
      %p113 = por %p111, %p112
      %s115 = sadd.s32 %s114, 1
      %p118 = scmp.eq.s32.totalorder %s17, 1
      %p119 = scmp.ne.s32.totalorder %s114, %s116
      %p120 = scmp.eq.s32.totalorder %s17, 0
      %p121 = por %p119, %p120
      %p122 = scmp.ne.s32.totalorder %s114, %s116
      %p123 = scmp.eq.s32.totalorder %s22, 1
      %p124 = por %p122, %p123
      %p125 = scmp.ne.s32.totalorder %s116, %s117
      %p126 = scmp.eq.s32.totalorder %s22, 0
      %p127 = por %p125, %p126
      %p128 = scmp.ne.s32.totalorder %s116, %s117
      %p129 = scmp.eq.s32.totalorder %s23, 1
      %p130 = por %p128, %p129
      %p132 = scmp.ne.s32.totalorder %s117, %s131
      %p133 = scmp.eq.s32.totalorder %s23, 0
      %p134 = por %p132, %p133
      %s135 = ssub.s32 %s17, %s24
      %p136 = scmp.eq.s32.totalorder %s135, 0
      %s138 = sadd.s32 %s137, 1
      %s139 = scalar_select %p136, %s137, %s138
      %p142 = pneg %p136
      %p143 = scmp.eq.s32.totalorder %s17, 1
      %p144 = por %p142, %p143
      %p145 = scmp.ne.s32.totalorder %s137, %s140
      %p146 = scmp.eq.s32.totalorder %s17, 0
      %p147 = por %p145, %p146
      %p148 = scmp.ne.s32.totalorder %s137, %s140
      %p149 = scmp.eq.s32.totalorder %s22, 1
      %p150 = por %p148, %p149
      %p151 = scmp.ne.s32.totalorder %s140, %s141
      %p152 = scmp.eq.s32.totalorder %s22, 0
      %p153 = por %p151, %p152
      %p154 = scmp.ne.s32.totalorder %s140, %s141
      %p155 = scmp.eq.s32.totalorder %s23, 1
      %p156 = por %p154, %p155
      %p158 = scmp.ne.s32.totalorder %s141, %s157
      %p159 = scmp.eq.s32.totalorder %s23, 0
      %p160 = por %p158, %p159
      %p161 = scmp.le.s32.totalorder 1, %s17
      %p162 = scmp.lt.s32.totalorder %s17, 3
      %p163 = pnand %p161, %p162
      %p164 = pneg %p163
      // Predicated region
      $region9: #{tpu_custom_call.1} parent=5 // pred_check
        _
      $region10: #{tpu_custom_call.1} parent=5 // pred_check_branch
        %166 = sbr.rel (%p163) target = $region12
      $region11: #{tpu_custom_call.1} parent=5 // pred_region
        %s167 = ssub.s32 %s17, 1
        // Predicated region
        $region13: #{tpu_custom_call.1} parent=11 // pred_check
          %p168 = pneg %p64
        $region14: #{tpu_custom_call.1} parent=11 // pred_check_branch
          %170 = sbr.rel (%p168) target = $region16
        $region15: #{tpu_custom_call.1} parent=11 // pred_region
          _
        $region16: #{tpu_custom_call.1} parent=11 // pred_fallthru
          _
        // Predicated region
        $region17: #{tpu_custom_call.1} parent=11 // pred_check
          %p171 = pneg %p85
        $region18: #{tpu_custom_call.1} parent=11 // pred_check_branch
          %173 = sbr.rel (%p171) target = $region20
        $region19: #{tpu_custom_call.1} parent=11 // pred_region
          _
        $region20: #{tpu_custom_call.1} parent=11 // pred_fallthru
          _
        // Predicated region
        $region21: #{tpu_custom_call.1} parent=11 // pred_check
          %p174 = pneg %p106
        $region22: #{tpu_custom_call.1} parent=11 // pred_check_branch
          %176 = sbr.rel (%p174) target = $region24
        $region23: #{tpu_custom_call.1} parent=11 // pred_region
          _
        $region24: #{tpu_custom_call.1} parent=11 // pred_fallthru
          _
        // Predicated region
        $region25: #{tpu_custom_call.1} parent=11 // pred_check
          %p177 = pneg %p127
        $region26: #{tpu_custom_call.1} parent=11 // pred_check_branch
          %179 = sbr.rel (%p177) target = $region28
        $region27: #{tpu_custom_call.1} parent=11 // pred_region
          _
        $region28: #{tpu_custom_call.1} parent=11 // pred_fallthru
          _
      $region12: #{tpu_custom_call.1} parent=5 // pred_fallthru
        _
      %p180 = scmp.lt.s32.totalorder %s17, 2
      // Predicated region
      $region29: #{tpu_custom_call.1} parent=5 // pred_check
        %p181 = pneg %p180
      $region30: #{tpu_custom_call.1} parent=5 // pred_check_branch
        %183 = sbr.rel (%p181) target = $region32
      $region31: #{tpu_custom_call.1} parent=5 // pred_region
        // Predicated region
        $region33: #{tpu_custom_call.1} parent=31 // pred_check
          %p184 = pneg %p37
        $region34: #{tpu_custom_call.1} parent=31 // pred_check_branch
          %186 = sbr.rel (%p184) target = $region36
        $region35: #{tpu_custom_call.1} parent=31 // pred_region
          %s187 = sand.u32 %s27, 1
          %s188 = scalar_lea.sflag [#allocation4], %s187
          %s189 = sand.u32 %s27, 1
          %s190 = smul.addr %s189, 8
          %s191 = scalar_lea.vmem [#allocation3], %s190
          %s193 = ssub.s32 128, 128
          %194 = vsyncadd %s188, %s193
          %s195 = smul.addr %s17, 2
          %s196 = smul.addr %s195, 64
          %s197 = scalar_lea.hbm %s0, %s196
          %s199 = sshll.u32 %s191, 4
          %s200 = int_to_ptr.vmem [resolvable:$true] %s199
          %202 = dma.hbm_to_vmem [thread:$0]  %s197, 128, %s200, %s188
        $region36: #{tpu_custom_call.1} parent=31 // pred_fallthru
          _
      $region32: #{tpu_custom_call.1} parent=5 // pred_fallthru
        _
      %p203 = scmp.le.s32.totalorder 1, %s17
      %p204 = scmp.lt.s32.totalorder %s17, 3
      %p205 = pnand %p203, %p204
      %p206 = pneg %p205
      // Predicated region
      $region37: #{tpu_custom_call.1} parent=5 // pred_check
        _
      $region38: #{tpu_custom_call.1} parent=5 // pred_check_branch
        %208 = sbr.rel (%p205) target = $region40
      $region39: #{tpu_custom_call.1} parent=5 // pred_region
        %s209 = ssub.s32 %s17, 1
        %s210 = sand.u32 %s30, 1
        %s211 = scalar_lea.sflag [#allocation4], %s210
        %s212 = sand.u32 %s30, 1
        %s213 = smul.addr %s212, 8
        %s214 = scalar_lea.vmem [#allocation3], %s213
        // Predicated region
        $region41: #{tpu_custom_call.1} parent=39 // pred_check
          %p215 = pneg %p43
        $region42: #{tpu_custom_call.1} parent=39 // pred_check_branch
          %217 = sbr.rel (%p215) target = $region44
        $region43: #{tpu_custom_call.1} parent=39 // pred_region
          %218 = dma.done %s211, 128
        $region44: #{tpu_custom_call.1} parent=39 // pred_fallthru
          _
        %s219 = sand.u32 %s30, 1
        %s220 = scalar_lea.sflag [#allocation4], %s219
        %s221 = sand.u32 %s30, 1
        %s222 = smul.addr %s221, 8
        %s223 = scalar_lea.vmem [#allocation3], %s222
        %p224 = pneg %p43
        %p225 = pneg %p40
        %p226 = pneg %p64
        %p227 = pneg %p61
        %p228 = pneg %p85
        %p229 = pneg %p82
        %p230 = pneg %p106
        %p231 = pneg %p103
        %p232 = pneg %p127
        %p233 = pneg %p124
        %p234 = pneg %p153
        %p235 = pneg %p150
        %s236 = sand.u32 %s140, 1
        %s237 = scalar_lea.sflag [#allocation5], %s236
        %s238 = sand.u32 %s140, 1
        %s239 = smul.addr %s238, 8
        %s240 = scalar_lea.vmem [#allocation6], %s239
        %v241 = vlaneseq
        %v242 = vand.u32 %v241, 127
        %v243 = vadd.s32 %v242, 128
        %v244 = vand.u32 %v242, 15
        %v245 = vand.u32 %v243, 15
        %vm246 = vcmp.eq.s32.totalorder %v244, 0
        %vm247 = vcmp.eq.s32.totalorder %v245, 0
        %vm248 = vcmp.eq.s32.totalorder %v244, 15
        %vm249 = vcmp.eq.s32.totalorder %v245, 15
        %vm250 = vcmp.lt.s32.totalorder %v242, 16
        %vm251 = vcmp.lt.s32.totalorder %v243, 16
        %vm252 = vcmp.ge.s32.totalorder %v242, 240
        %vm253 = vcmp.ge.s32.totalorder %v243, 240
        %v254 = vld [vmem:[%s214] sm:$0xff]
        %v256 = vcombine.high %v254, %v254
        %257 = vrot.lane.b32.xlu0 %v254, 112
        %v258 = vpop.permute.xlu0 %257
        %259 = vrot.lane.b32.xlu0 %v256, 112
        %v260 = vpop.permute.xlu0 %259
        %vm261 = vcmask 916480
        %v262 = vsel %vm261, %v258, %v260
        %v266 = vsel %vm261, %v260, %v258
        %267 = vrot.lane.b32.xlu0 %v256, 16
        %v268 = vpop.permute.xlu0 %267
        %270 = vrot.lane.b32.xlu0 %v254, 16
        %v271 = vpop.permute.xlu0 %270
        %vm272 = vcmask 130048
        %v273 = vsel %vm272, %v271, %v268
        %v276 = vsel %vm272, %v268, %v271
        %v277 = vsel %vm250, %v262, %v276
        %v278 = vsel %vm251, %v266, %v273
        %v279 = vsel %vm252, %v276, %v262
        %v280 = vsel %vm253, %v273, %v266
        %283 = vrot.lane.b32.xlu0 %v277, 127
        %v284 = vpop.permute.xlu0 %283
        %285 = vrot.lane.b32.xlu0 %v278, 127
        %v286 = vpop.permute.xlu0 %285
        %vm287 = vcmask 1039360
        %v288 = vsel %vm287, %v284, %v286
        %v292 = vsel %vm287, %v286, %v284
        %293 = vrot.lane.b32.xlu0 %v278, 1
        %v294 = vpop.permute.xlu0 %293
        %296 = vrot.lane.b32.xlu0 %v277, 1
        %v297 = vpop.permute.xlu0 %296
        %vm298 = vcmask 7168
        %v299 = vsel %vm298, %v297, %v294
        %v302 = vsel %vm298, %v294, %v297
        %v303 = vsel %vm246, %v288, %v302
        %v304 = vsel %vm247, %v292, %v299
        %v305 = vsel %vm248, %v302, %v288
        %v306 = vsel %vm249, %v299, %v292
        %307 = vst [vmem:[#allocation2] sm:$0xf] %v303
        %308 = vst [vmem:[#allocation2 + $0x8] sm:$0xf] %v304
        %v309 = vrot.slane %v277, 4
        %v310 = vrot.slane %v278, 4
        %313 = vst [vmem:[#allocation2] sm:$0xf0] %v309
        %314 = vst [vmem:[#allocation2 + $0x8] sm:$0xf0] %v310
        %315 = vst [vmem:[#allocation2 + $0x10] sm:$0xf] %v305
        %316 = vst [vmem:[#allocation2 + $0x18] sm:$0xf] %v306
        %317 = vrot.lane.b32.xlu0 %v254, 127
        %v318 = vpop.permute.xlu0 %317
        %319 = vrot.lane.b32.xlu0 %v256, 127
        %v320 = vpop.permute.xlu0 %319
        %v321 = vsel %vm287, %v318, %v320
        %v325 = vsel %vm287, %v320, %v318
        %326 = vrot.lane.b32.xlu0 %v256, 1
        %v327 = vpop.permute.xlu0 %326
        %329 = vrot.lane.b32.xlu0 %v254, 1
        %v330 = vpop.permute.xlu0 %329
        %v331 = vsel %vm298, %v330, %v327
        %v334 = vsel %vm298, %v327, %v330
        %v335 = vsel %vm246, %v321, %v334
        %v336 = vsel %vm247, %v325, %v331
        %v337 = vsel %vm248, %v334, %v321
        %v338 = vsel %vm249, %v331, %v325
        %v341 = vrot.slane %v335, 4
        %v342 = vrot.slane %v336, 4
        %345 = vst [vmem:[#allocation2 + $0x10] sm:$0xf0] %v341
        %346 = vst [vmem:[#allocation2 + $0x18] sm:$0xf0] %v342
        %348 = vst [vmem:[#allocation2 + $0x20] sm:$0xf] %v254
        %349 = vst [vmem:[#allocation2 + $0x28] sm:$0xf] %v256
        %v352 = vrot.slane %v337, 4
        %v353 = vrot.slane %v338, 4
        %356 = vst [vmem:[#allocation2 + $0x20] sm:$0xf0] %v352
        %357 = vst [vmem:[#allocation2 + $0x28] sm:$0xf0] %v353
        %360 = vrot.lane.b32.xlu0 %v279, 127
        %v361 = vpop.permute.xlu0 %360
        %362 = vrot.lane.b32.xlu0 %v280, 127
        %v363 = vpop.permute.xlu0 %362
        %v364 = vsel %vm287, %v361, %v363
        %v368 = vsel %vm287, %v363, %v361
        %369 = vrot.lane.b32.xlu0 %v280, 1
        %v370 = vpop.permute.xlu0 %369
        %372 = vrot.lane.b32.xlu0 %v279, 1
        %v373 = vpop.permute.xlu0 %372
        %v374 = vsel %vm298, %v373, %v370
        %v377 = vsel %vm298, %v370, %v373
        %v378 = vsel %vm246, %v364, %v377
        %v379 = vsel %vm247, %v368, %v374
        %v380 = vsel %vm248, %v377, %v364
        %v381 = vsel %vm249, %v374, %v368
        %382 = vst [vmem:[#allocation2 + $0x30] sm:$0xf] %v378
        %383 = vst [vmem:[#allocation2 + $0x38] sm:$0xf] %v379
        %v384 = vrot.slane %v279, 4
        %v385 = vrot.slane %v280, 4
        %388 = vst [vmem:[#allocation2 + $0x30] sm:$0xf0] %v384
        %389 = vst [vmem:[#allocation2 + $0x38] sm:$0xf0] %v385
        %390 = vst [vmem:[#allocation2 + $0x40] sm:$0xf] %v380
        %391 = vst [vmem:[#allocation2 + $0x48] sm:$0xf] %v381
        %v392 = vld [vmem:[%s1] sm:$0xf]
        %v393 = vld [vmem:[#allocation2] sm:$0xff]
        %v394 = vld [vmem:[#allocation2 + $0x8] sm:$0xff]
        %v395 = vld [vmem:[#allocation2 + $0x10] sm:$0xff]
        %v396 = vld [vmem:[#allocation2 + $0x18] sm:$0xff]
        %v397 = vld [vmem:[#allocation2 + $0x20] sm:$0xff]
        %v398 = vld [vmem:[#allocation2 + $0x28] sm:$0xff]
        %v399 = vld [vmem:[#allocation2 + $0x30] sm:$0xff]
        %v400 = vld [vmem:[#allocation2 + $0x38] sm:$0xff]
        %v401 = vld [vmem:[#allocation2 + $0x40] sm:$0xf]
        %v402 = vld [vmem:[#allocation2 + $0x48] sm:$0xf]
        %v403 = vld [vmem:[%s2] sm:$0xf]
        %405 = vset.pattern.permute.xlu0 0
        %406 = vperm.xlu0 %405, %v403
        %v407 = vpop.permute.xlu0 %406
        %vm409 = vcmask 293888
        %v411 = vsel %vm409, %v392, 0
        %vm413 = vcmask 1043456
        %v415 = vsel %vm413, %v401, 0
        %v418 = vsel %vm413, %v402, 0
        %420 = vmatprep.subr.mxu0 0.0
        %421 = vmatpush1.msra.mxu0 0.0
        %422 = vmatprep.subr.mxu0 0.0
        %423 = vmatpush1.msra.mxu0 0.0
        %424 = vmatprep.subr.mxu0 0.0
        %425 = vmatpush1.msra.mxu0 0.0
        %426 = vmatprep.subr.mxu0 0.0
        %427 = vmatpush1.msra.mxu0 0.0
        %428 = vmatprep.subr.mxu0 0.0
        %429 = vmatpush1.msra.mxu0 0.0
        %430 = vmatprep.subr.mxu0 0.0
        %431 = vmatpush1.msra.mxu0 0.0
        %432 = vmatprep.subr.mxu0 0.0
        %433 = vmatpush1.msra.mxu0 0.0
        %434 = vmatprep.subr.mxu0 0.0
        %435 = vmatpush1.msra.mxu0 0.0
        %436 = vmatprep.subr.mxu0 0.0
        %437 = vmatpush1.msra.mxu0 0.0
        %438 = vmatprep.subr.mxu0 0.0
        %439 = vmatpush1.msra.mxu0 0.0
        %440 = vmatprep.subr.mxu0 0.0
        %441 = vmatpush1.msra.mxu0 0.0
        %442 = vmatprep.subr.mxu0 %v418
        %443 = vmatpush1.msra.mxu0 %v415
        %444 = vmatprep.subr.mxu0 %v400
        %445 = vmatpush1.msra.mxu0 %v399
        %446 = vmatprep.subr.mxu0 %v398
        %447 = vmatpush1.msra.mxu0 %v397
        %448 = vmatprep.subr.mxu0 %v396
        %449 = vmatpush1.msra.mxu0 %v395
        %450 = vmatprep.subr.mxu0 %v394
        %451 = vmatpush1.msra.mxu0 %v393
        %452 = vmatprep.subr.mxu0 0.0
        %453 = vmatpush2.msra.mxu0 0.0
        %454 = vmatprep.subr.mxu0 0.0
        %455 = vmatpush2.msra.mxu0 0.0
        %456 = vmatprep.subr.mxu0 0.0
        %457 = vmatpush2.msra.mxu0 0.0
        %458 = vmatprep.subr.mxu0 0.0
        %459 = vmatpush2.msra.mxu0 0.0
        %460 = vmatprep.subr.mxu0 0.0
        %461 = vmatpush2.msra.mxu0 0.0
        %462 = vmatprep.subr.mxu0 0.0
        %463 = vmatpush2.msra.mxu0 0.0
        %464 = vmatprep.subr.mxu0 0.0
        %465 = vmatpush2.msra.mxu0 0.0
        %466 = vmatprep.subr.mxu0 0.0
        %467 = vmatpush2.msra.mxu0 0.0
        %468 = vmatprep.subr.mxu0 0.0
        %469 = vmatpush2.msra.mxu0 0.0
        %470 = vmatprep.subr.mxu0 0.0
        %471 = vmatpush2.msra.mxu0 0.0
        %472 = vmatprep.subr.mxu0 0.0
        %473 = vmatpush2.msra.mxu0 0.0
        %474 = vmatprep.subr.mxu0 0.0
        %475 = vmatpush2.msra.mxu0 0.0
        %476 = vmatprep.subr.mxu0 0.0
        %477 = vmatpush2.msra.mxu0 0.0
        %478 = vmatprep.subr.mxu0 0.0
        %479 = vmatpush2.msra.mxu0 0.0
        %480 = vmatprep.subr.mxu0 0.0
        %481 = vmatpush2.msra.mxu0 0.0
        %482 = vmatprep.subr.mxu0 0.0
        %483 = vmatpush2.msra.mxu0 0.0
        %484 = vmatprep.mubr.f32.mxu0 0.0
        %485 = vmatmul.mubr.f32.gmra.mxu0 %v411
        %v486 = vpop.f32.mrf.mxu0
        %v487 = vadd.f32 %v407, %v486
        %v488 = vpop.f32.mrf.mxu0
        %v489 = vadd.f32 %v407, %v488
        %490 = vdwg.mxu0
        %v491 = vsel %vm413, %v487, 0.0
        %v492 = vsel %vm413, %v489, 0.0
        %v493 = vadd.f32 %v491, %v492
        %494 = vadd.xlane.f32.xlu0 %v493
        %v495 = vpop.xlane.xlu0 %494
        %v496 = vmul.f32 %v495, 0.00390625
        %v497 = vsub.f32 %v487, %v496
        %v498 = vsub.f32 %v489, %v496
        %v499 = vmul.f32 %v497, %v497
        %v500 = vmul.f32 %v498, %v498
        %v501 = vsel %vm413, %v499, 0.0
        %v502 = vsel %vm413, %v500, 0.0
        %v503 = vadd.f32 %v501, %v502
        %504 = vadd.xlane.f32.xlu0 %v503
        %v505 = vpop.xlane.xlu0 %504
        %v506 = vmul.f32 %v505, 0.00390625
        %v507 = vadd.f32 %v506, 1e-05
        %v508 = vrsqrt.pop %v507
        %v509 = vmul.f32 %v497, %v508
        %v510 = vmul.f32 %v498, %v508
        %v511 = vmax.f32 %v509, 0.0
        %v512 = vmax.f32 %v510, 0.0
        %515 = vrot.lane.b32.xlu0 %v511, 112
        %v516 = vpop.permute.xlu0 %515
        %517 = vrot.lane.b32.xlu0 %v512, 112
        %v518 = vpop.permute.xlu0 %517
        %v519 = vsel %vm261, %v516, %v518
        %v523 = vsel %vm261, %v518, %v516
        %524 = vrot.lane.b32.xlu0 %v512, 16
        %v525 = vpop.permute.xlu0 %524
        %527 = vrot.lane.b32.xlu0 %v511, 16
        %v528 = vpop.permute.xlu0 %527
        %v529 = vsel %vm272, %v528, %v525
        %v532 = vsel %vm272, %v525, %v528
        %v533 = vsel %vm250, %v519, %v532
        %v534 = vsel %vm251, %v523, %v529
        %v535 = vsel %vm252, %v532, %v519
        %v536 = vsel %vm253, %v529, %v523
        %539 = vrot.lane.b32.xlu0 %v533, 127
        %v540 = vpop.permute.xlu0 %539
        %541 = vrot.lane.b32.xlu0 %v534, 127
        %v542 = vpop.permute.xlu0 %541
        %v543 = vsel %vm287, %v540, %v542
        %v547 = vsel %vm287, %v542, %v540
        %548 = vrot.lane.b32.xlu0 %v534, 1
        %v549 = vpop.permute.xlu0 %548
        %551 = vrot.lane.b32.xlu0 %v533, 1
        %v552 = vpop.permute.xlu0 %551
        %v553 = vsel %vm298, %v552, %v549
        %v556 = vsel %vm298, %v549, %v552
        %v557 = vsel %vm246, %v543, %v556
        %v558 = vsel %vm247, %v547, %v553
        %v559 = vsel %vm248, %v556, %v543
        %v560 = vsel %vm249, %v553, %v547
        %561 = vst [vmem:[#allocation2] sm:$0xf] %v557
        %562 = vst [vmem:[#allocation2 + $0x8] sm:$0xf] %v558
        %v563 = vrot.slane %v533, 4
        %v564 = vrot.slane %v534, 4
        %567 = vst [vmem:[#allocation2] sm:$0xf0] %v563
        %568 = vst [vmem:[#allocation2 + $0x8] sm:$0xf0] %v564
        %569 = vst [vmem:[#allocation2 + $0x10] sm:$0xf] %v559
        %570 = vst [vmem:[#allocation2 + $0x18] sm:$0xf] %v560
        %571 = vrot.lane.b32.xlu0 %v511, 127
        %v572 = vpop.permute.xlu0 %571
        %573 = vrot.lane.b32.xlu0 %v512, 127
        %v574 = vpop.permute.xlu0 %573
        %v575 = vsel %vm287, %v572, %v574
        %v579 = vsel %vm287, %v574, %v572
        %580 = vrot.lane.b32.xlu0 %v512, 1
        %v581 = vpop.permute.xlu0 %580
        %583 = vrot.lane.b32.xlu0 %v511, 1
        %v584 = vpop.permute.xlu0 %583
        %v585 = vsel %vm298, %v584, %v581
        %v588 = vsel %vm298, %v581, %v584
        %v589 = vsel %vm246, %v575, %v588
        %v590 = vsel %vm247, %v579, %v585
        %v591 = vsel %vm248, %v588, %v575
        %v592 = vsel %vm249, %v585, %v579
        %v595 = vrot.slane %v589, 4
        %v596 = vrot.slane %v590, 4
        %599 = vst [vmem:[#allocation2 + $0x10] sm:$0xf0] %v595
        %600 = vst [vmem:[#allocation2 + $0x18] sm:$0xf0] %v596
        %601 = vst [vmem:[#allocation2 + $0x20] sm:$0xf] %v511
        %602 = vst [vmem:[#allocation2 + $0x28] sm:$0xf] %v512
        %v605 = vrot.slane %v591, 4
        %v606 = vrot.slane %v592, 4
        %609 = vst [vmem:[#allocation2 + $0x20] sm:$0xf0] %v605
        %610 = vst [vmem:[#allocation2 + $0x28] sm:$0xf0] %v606
        %613 = vrot.lane.b32.xlu0 %v535, 127
        %v614 = vpop.permute.xlu0 %613
        %615 = vrot.lane.b32.xlu0 %v536, 127
        %v616 = vpop.permute.xlu0 %615
        %v617 = vsel %vm287, %v614, %v616
        %v621 = vsel %vm287, %v616, %v614
        %622 = vrot.lane.b32.xlu0 %v536, 1
        %v623 = vpop.permute.xlu0 %622
        %625 = vrot.lane.b32.xlu0 %v535, 1
        %v626 = vpop.permute.xlu0 %625
        %v627 = vsel %vm298, %v626, %v623
        %v630 = vsel %vm298, %v623, %v626
        %v631 = vsel %vm246, %v617, %v630
        %v632 = vsel %vm247, %v621, %v627
        %v633 = vsel %vm248, %v630, %v617
        %v634 = vsel %vm249, %v627, %v621
        %635 = vst [vmem:[#allocation2 + $0x30] sm:$0xf] %v631
        %636 = vst [vmem:[#allocation2 + $0x38] sm:$0xf] %v632
        %v637 = vrot.slane %v535, 4
        %v638 = vrot.slane %v536, 4
        %641 = vst [vmem:[#allocation2 + $0x30] sm:$0xf0] %v637
        %642 = vst [vmem:[#allocation2 + $0x38] sm:$0xf0] %v638
        %643 = vst [vmem:[#allocation2 + $0x40] sm:$0xf] %v633
        %644 = vst [vmem:[#allocation2 + $0x48] sm:$0xf] %v634
        %v645 = vld [vmem:[%s3] sm:$0xf]
        %v646 = vld [vmem:[#allocation2] sm:$0xff]
        %v647 = vld [vmem:[#allocation2 + $0x8] sm:$0xff]
        %v648 = vld [vmem:[#allocation2 + $0x10] sm:$0xff]
        %v649 = vld [vmem:[#allocation2 + $0x18] sm:$0xff]
        %v650 = vld [vmem:[#allocation2 + $0x20] sm:$0xff]
        %v651 = vld [vmem:[#allocation2 + $0x28] sm:$0xff]
        %v652 = vld [vmem:[#allocation2 + $0x30] sm:$0xff]
        %v653 = vld [vmem:[#allocation2 + $0x38] sm:$0xff]
        %v654 = vld [vmem:[#allocation2 + $0x40] sm:$0xf]
        %v655 = vld [vmem:[#allocation2 + $0x48] sm:$0xf]
        %v656 = vld [vmem:[%s4] sm:$0xf]
        %658 = vset.pattern.permute.xlu0 0
        %659 = vperm.xlu0 %658, %v656
        %v660 = vpop.permute.xlu0 %659
        %v663 = vsel %vm409, %v645, 0
        %v666 = vsel %vm413, %v654, 0
        %v669 = vsel %vm413, %v655, 0
        %671 = vmatprep.subr.mxu0 0.0
        %672 = vmatpush1.msra.mxu0 0.0
        %673 = vmatprep.subr.mxu0 0.0
        %674 = vmatpush1.msra.mxu0 0.0
        %675 = vmatprep.subr.mxu0 0.0
        %676 = vmatpush1.msra.mxu0 0.0
        %677 = vmatprep.subr.mxu0 0.0
        %678 = vmatpush1.msra.mxu0 0.0
        %679 = vmatprep.subr.mxu0 0.0
        %680 = vmatpush1.msra.mxu0 0.0
        %681 = vmatprep.subr.mxu0 0.0
        %682 = vmatpush1.msra.mxu0 0.0
        %683 = vmatprep.subr.mxu0 0.0
        %684 = vmatpush1.msra.mxu0 0.0
        %685 = vmatprep.subr.mxu0 0.0
        %686 = vmatpush1.msra.mxu0 0.0
        %687 = vmatprep.subr.mxu0 0.0
        %688 = vmatpush1.msra.mxu0 0.0
        %689 = vmatprep.subr.mxu0 0.0
        %690 = vmatpush1.msra.mxu0 0.0
        %691 = vmatprep.subr.mxu0 0.0
        %692 = vmatpush1.msra.mxu0 0.0
        %693 = vmatprep.subr.mxu0 %v669
        %694 = vmatpush1.msra.mxu0 %v666
        %695 = vmatprep.subr.mxu0 %v653
        %696 = vmatpush1.msra.mxu0 %v652
        %697 = vmatprep.subr.mxu0 %v651
        %698 = vmatpush1.msra.mxu0 %v650
        %699 = vmatprep.subr.mxu0 %v649
        %700 = vmatpush1.msra.mxu0 %v648
        %701 = vmatprep.subr.mxu0 %v647
        %702 = vmatpush1.msra.mxu0 %v646
        %703 = vmatprep.subr.mxu0 0.0
        %704 = vmatpush2.msra.mxu0 0.0
        %705 = vmatprep.subr.mxu0 0.0
        %706 = vmatpush2.msra.mxu0 0.0
        %707 = vmatprep.subr.mxu0 0.0
        %708 = vmatpush2.msra.mxu0 0.0
        %709 = vmatprep.subr.mxu0 0.0
        %710 = vmatpush2.msra.mxu0 0.0
        %711 = vmatprep.subr.mxu0 0.0
        %712 = vmatpush2.msra.mxu0 0.0
        %713 = vmatprep.subr.mxu0 0.0
        %714 = vmatpush2.msra.mxu0 0.0
        %715 = vmatprep.subr.mxu0 0.0
        %716 = vmatpush2.msra.mxu0 0.0
        %717 = vmatprep.subr.mxu0 0.0
        %718 = vmatpush2.msra.mxu0 0.0
        %719 = vmatprep.subr.mxu0 0.0
        %720 = vmatpush2.msra.mxu0 0.0
        %721 = vmatprep.subr.mxu0 0.0
        %722 = vmatpush2.msra.mxu0 0.0
        %723 = vmatprep.subr.mxu0 0.0
        %724 = vmatpush2.msra.mxu0 0.0
        %725 = vmatprep.subr.mxu0 0.0
        %726 = vmatpush2.msra.mxu0 0.0
        %727 = vmatprep.subr.mxu0 0.0
        %728 = vmatpush2.msra.mxu0 0.0
        %729 = vmatprep.subr.mxu0 0.0
        %730 = vmatpush2.msra.mxu0 0.0
        %731 = vmatprep.subr.mxu0 0.0
        %732 = vmatpush2.msra.mxu0 0.0
        %733 = vmatprep.subr.mxu0 0.0
        %734 = vmatpush2.msra.mxu0 0.0
        %735 = vmatprep.mubr.f32.mxu0 0.0
        %736 = vmatmul.mubr.f32.gmra.mxu0 %v663
        %v737 = vpop.f32.mrf.mxu0
        %v738 = vadd.f32 %v660, %v737
        %v739 = vpop.f32.mrf.mxu0
        %v740 = vadd.f32 %v660, %v739
        %741 = vdwg.mxu0
        %v742 = vsel %vm413, %v738, 0.0
        %v743 = vsel %vm413, %v740, 0.0
        %v744 = vadd.f32 %v742, %v743
        %745 = vadd.xlane.f32.xlu0 %v744
        %v746 = vpop.xlane.xlu0 %745
        %v747 = vmul.f32 %v746, 0.00390625
        %v748 = vsub.f32 %v738, %v747
        %v749 = vsub.f32 %v740, %v747
        %v750 = vmul.f32 %v748, %v748
        %v751 = vmul.f32 %v749, %v749
        %v752 = vsel %vm413, %v750, 0.0
        %v753 = vsel %vm413, %v751, 0.0
        %v754 = vadd.f32 %v752, %v753
        %755 = vadd.xlane.f32.xlu0 %v754
        %v756 = vpop.xlane.xlu0 %755
        %v757 = vmul.f32 %v756, 0.00390625
        %v758 = vadd.f32 %v757, 1e-05
        %v759 = vrsqrt.pop %v758
        %v760 = vmul.f32 %v748, %v759
        %v761 = vmul.f32 %v749, %v759
        %v764 = vcombine.low %v760, %v761
        %v766 = vadd.f32 %v254, %v764
        %767 = vst [vmem:[%s240] sm:$0xff] %v766
        %s768 = sand.u32 %s140, 1
        %s769 = scalar_lea.sflag [#allocation5], %s768
        %s770 = sand.u32 %s140, 1
        %s771 = smul.addr %s770, 8
        %s772 = scalar_lea.vmem [#allocation6], %s771
        // Predicated region
        $region45: #{tpu_custom_call.1} parent=39 // pred_check
          %p773 = pneg %p150
        $region46: #{tpu_custom_call.1} parent=39 // pred_check_branch
          %775 = sbr.rel (%p773) target = $region48
        $region47: #{tpu_custom_call.1} parent=39 // pred_region
          %s777 = ssub.s32 128, 128
          %778 = vsyncadd %s769, %s777
          %s779 = smul.addr %s22, 2
          %s780 = smul.addr %s779, 64
          %s781 = scalar_lea.hbm %s5, %s780
          %s783 = sshll.u32 %s772, 4
          %s784 = int_to_ptr.vmem [resolvable:$true] %s783
          %786 = dma.vmem_to_hbm [thread:$0]  %s784, 128, %s781, %s769
        $region48: #{tpu_custom_call.1} parent=39 // pred_fallthru
          _
      $region40: #{tpu_custom_call.1} parent=5 // pred_fallthru
        _
      %p787 = scmp.le.s32.totalorder 2, %s17
      // Predicated region
      $region49: #{tpu_custom_call.1} parent=5 // pred_check
        %p788 = pneg %p787
      $region50: #{tpu_custom_call.1} parent=5 // pred_check_branch
        %790 = sbr.rel (%p788) target = $region52
      $region51: #{tpu_custom_call.1} parent=5 // pred_region
        %s791 = ssub.s32 %s17, 2
        // Predicated region
        $region53: #{tpu_custom_call.1} parent=51 // pred_check
          %p792 = pneg %p156
        $region54: #{tpu_custom_call.1} parent=51 // pred_check_branch
          %794 = sbr.rel (%p792) target = $region56
        $region55: #{tpu_custom_call.1} parent=51 // pred_region
          %s795 = sand.u32 %s141, 1
          %s796 = scalar_lea.sflag [#allocation5], %s795
          %s797 = sand.u32 %s141, 1
          %s798 = smul.addr %s797, 8
          %s799 = scalar_lea.vmem [#allocation6], %s798
          %800 = dma.done %s796, 128
        $region56: #{tpu_custom_call.1} parent=51 // pred_fallthru
          _
      $region52: #{tpu_custom_call.1} parent=5 // pred_fallthru
        _
    $region6: #{tpu_custom_call.1} parent=1 // loop_footer
      %s21 = sadd.s32 1, %s17
    $region7: #{tpu_custom_call.1} parent=1 // loop_footer_branch
      %16 = sbr.rel target = $region3
    $region8: #{tpu_custom_call.1} parent=1 // loop_exit
      _
    %801 = vsyncpa [#allocation4], 1
    %s802 = scalar_lea.sflag [#allocation4], 1
    %803 = vsyncpa %s802, 1
    %804 = vsyncpa [#allocation5], 1
    %s805 = scalar_lea.sflag [#allocation5], 1
    %806 = vsyncpa %s805, 1

</llo_original>
